<compile_context>
chip_gen: v7x
topology: tpu7x:2x2x1
jax: 0.10.0
libtpu: 0.0.40
codegen_flags: <defaults>
</compile_context>

<pallas_src>
import jax
import jax.numpy as jnp
from jax import lax
from jax.scipy.linalg import block_diag
from jax.experimental import pallas as pl
from jax.experimental.pallas import tpu as pltpu


def _round_up(x, m):
    return ((x + m - 1) // m) * m


_LANE = 128                       # pad Cout to a multiple of this (dense vst)
_VMEM_LIMIT = 32 * 1024 * 1024    # safe scoped-VMEM budget on v5e/v6e/v7x


# ------------------------------------------------------------------
# Pallas kernel 1: filter rotation exploiting block-diagonal structure.
#   bd @ fix_filt  ==  per-channel  Q[i] @ fix_filt[i*kk:(i+1)*kk, :]
# ------------------------------------------------------------------
def _rotate_kernel(q_ref, f_ref, o_ref):
    o_ref[...] = jnp.einsum(
        "cab,cbo->cao", q_ref[...], f_ref[...],
        preferred_element_type=jnp.float32).astype(o_ref.dtype)


def rotate_filter_pallas(Q, fix_filt3, *, channels_per_step=64):
    """Q: (in_ch, kk, kk);  fix_filt3: (in_ch, kk, out_ch) -> (in_ch, kk, out_ch)."""
    in_ch, kk, _ = Q.shape
    out_ch = fix_filt3.shape[-1]
    oc_pad = _round_up(out_ch, _LANE)          # lane-dense output stores
    ct = min(in_ch, channels_per_step)         # channels per grid step
    ic_pad = _round_up(in_ch, ct)

    Qp = jnp.pad(Q, ((0, ic_pad - in_ch), (0, 0), (0, 0)))
    Fp = jnp.pad(fix_filt3,
                 ((0, ic_pad - in_ch), (0, 0), (0, oc_pad - out_ch)))

    out = pl.pallas_call(
        _rotate_kernel,
        out_shape=jax.ShapeDtypeStruct((ic_pad, kk, oc_pad), fix_filt3.dtype),
        grid=(ic_pad // ct,),
        in_specs=[
            pl.BlockSpec((ct, kk, kk), lambda i: (i, 0, 0)),
            pl.BlockSpec((ct, kk, oc_pad), lambda i: (i, 0, 0)),
        ],
        out_specs=pl.BlockSpec((ct, kk, oc_pad), lambda i: (i, 0, 0)),
        compiler_params=pltpu.CompilerParams(
            dimension_semantics=("parallel",),
            vmem_limit_bytes=_VMEM_LIMIT),
        cost_estimate=pl.CostEstimate(
            flops=2 * ic_pad * kk * kk * oc_pad,
            transcendentals=0,
            bytes_accessed=4 * (Qp.size + Fp.size + ic_pad * kk * oc_pad)),
    )(Qp, Fp)
    return out[:in_ch, :, :out_ch]


# ------------------------------------------------------------------
# Pallas kernel 2: 2-D convolution, stride 1, explicit pre-padding.
# Grid = (batch * output-row-tiles), all parallel. Each step does kh*kw
# tap matmuls (M = ho_tile*wo, N = cout_pad) in bf16 with f32 accumulation.
# ------------------------------------------------------------------
def conv2d_pallas(x_nchw, filt_oihw, bias, *, padding=0, ho_tile=8):
    n, cin, h, w = x_nchw.shape
    cout, _, kh, kw = filt_oihw.shape
    ho = h + 2 * padding - kh + 1
    wo = w + 2 * padding - kw + 1
    ho_tile = max(1, min(ho_tile, ho))
    n_rt = pl.cdiv(ho, ho_tile)
    ho_pad = n_rt * ho_tile
    hwin = ho_tile + kh - 1                    # input rows needed per row tile
    wp = w + 2 * padding
    cout_pad = _round_up(cout, _LANE)

    # ---- wrapper-side layout plumbing (NCHW -> NHWC, pad, windows) ----
    x_nhwc = jnp.transpose(x_nchw, (0, 2, 3, 1))
    x_sp = jnp.pad(
        x_nhwc,
        ((0, 0), (padding, padding + (ho_pad - ho)), (padding, padding), (0, 0)))
    # Overlapping output-row windows are extracted here so the Pallas blocks
    # are plain non-overlapping tiles (halo duplication is only kh-1 rows/tile).
    row_idx = (jnp.arange(n_rt) * ho_tile)[:, None] + jnp.arange(hwin)[None, :]
    x_win = x_sp[:, row_idx, :, :].astype(jnp.bfloat16)   # (n, n_rt, hwin, wp, cin)
    x_win = x_win.reshape(n * n_rt, hwin, wp, cin)

    w_hwio = jnp.transpose(filt_oihw, (2, 3, 1, 0))        # (kh, kw, cin, cout)
    w_hwio = jnp.pad(w_hwio,
                     ((0, 0), (0, 0), (0, 0), (0, cout_pad - cout)))
    w_hwio = w_hwio.astype(jnp.bfloat16)
    bias_2d = jnp.pad(bias.reshape(1, cout).astype(jnp.float32),
                      ((0, 0), (0, cout_pad - cout)))

    def kernel(x_ref, w_ref, b_ref, o_ref):
        xv = x_ref[0]                          # (hwin, wp, cin)  bf16
        wv = w_ref[...]                        # (kh, kw, cin, cout_pad)  bf16
        acc = jnp.zeros((ho_tile * wo, cout_pad), jnp.float32)
        for iw in range(kw):                   # one sublane-shifted slice per iw
            xcol = xv[:, iw:iw + wo, :]        # (hwin, wo, cin)
            for ih in range(kh):               # leading-dim slices are cheap
                xs = xcol[ih:ih + ho_tile].reshape(ho_tile * wo, cin)
                acc = acc + jnp.dot(xs, wv[ih, iw],
                                    preferred_element_type=jnp.float32)
        acc = acc + b_ref[...]                 # (1, cout_pad) broadcast
        o_ref[...] = acc.reshape(1, ho_tile, wo, cout_pad).astype(o_ref.dtype)

    flops = 2 * (n * n_rt) * ho_tile * wo * kh * kw * cin * cout_pad
    bytes_accessed = (x_win.size * 2 + w_hwio.size * 2 + bias_2d.size * 4
                      + (n * n_rt) * ho_tile * wo * cout_pad * 4)

    out = pl.pallas_call(
        kernel,
        out_shape=jax.ShapeDtypeStruct((n * n_rt, ho_tile, wo, cout_pad),
                                       jnp.float32),
        grid=(n * n_rt,),
        in_specs=[
            pl.BlockSpec((1, hwin, wp, cin), lambda i: (i, 0, 0, 0)),
            pl.BlockSpec((kh, kw, cin, cout_pad), lambda i: (0, 0, 0, 0)),
            pl.BlockSpec((1, cout_pad), lambda i: (0, 0)),
        ],
        out_specs=pl.BlockSpec((1, ho_tile, wo, cout_pad),
                               lambda i: (i, 0, 0, 0)),
        compiler_params=pltpu.CompilerParams(
            dimension_semantics=("parallel",),
            vmem_limit_bytes=_VMEM_LIMIT),
        cost_estimate=pl.CostEstimate(flops=flops, transcendentals=0,
                                      bytes_accessed=bytes_accessed),
    )(x_win, w_hwio, bias_2d)

    out = out.reshape(n, ho_pad, wo, cout_pad)[:, :ho, :, :cout]
    return jnp.transpose(out, (0, 3, 1, 2))                # NCHW


# ------------------------------------------------------------------
# Plain-JAX glue for the module's helper math.
# ------------------------------------------------------------------
def project_batch(R, eps):
    # exact port of lora_diffusion.oft.project_batch ("I" is zeros there)
    eps = eps * 1.0 / jnp.sqrt(jnp.asarray(R.shape[0], R.dtype))
    I0 = jnp.zeros((R.shape[1], R.shape[1]), R.dtype)[None]
    diff = R - I0
    norm_diff = jnp.sqrt(jnp.sum(diff * diff, axis=(1, 2), keepdims=True))
    mask = norm_diff <= eps
    safe_norm = jnp.maximum(norm_diff, jnp.asarray(1e-20, R.dtype))  # 0/0 guard
    return jnp.where(mask, R, I0 + eps * (diff / safe_norm))


def cayley_batch(R):
    # TODO(synk): matrix inverse has no Pallas primitive; kept in plain JAX.
    r = R.shape[1]
    skew = 0.5 * (R - jnp.swapaxes(R, 1, 2))
    I = jnp.eye(r, dtype=R.dtype)[None]
    return jnp.matmul(I - skew, jnp.linalg.inv(I + skew))


# ------------------------------------------------------------------
# Full OFTInjectedConv2d forward (block_share=False, the module default)
# ------------------------------------------------------------------
def oft_injected_conv2d_forward(x_nchw, R, weight_oihw, bias, *,
                                eps=1e-3, stride=1, padding=0, ho_tile=8):
    out_ch, in_ch, k, _ = weight_oihw.shape
    kk = k * k

    # COFT projection (the in-place self.R.copy_(project_batch(...))) + Cayley.
    R_proj = project_batch(R, eps * kk * kk)
    Q = cayley_batch(R_proj)                                # (in_ch, kk, kk)

    # fix_filt = weight.view(kk*in_ch, out_ch) is a RAW contiguous reshape of
    # the OIHW tensor (quirky PyTorch OFT code; kept exactly).  The dense
    # block-diagonal matmul bd @ fix_filt collapses to per-channel products
    # Q[i] @ fix_filt[i*kk:(i+1)*kk, :], done in the Pallas rotation kernel.
    fix_filt3 = weight_oihw.reshape(kk * in_ch, out_ch).reshape(in_ch, kk, out_ch)
    filt3 = rotate_filter_pallas(Q, fix_filt3)              # (in_ch, kk, out_ch)
    filt = filt3.reshape(kk * in_ch, out_ch).reshape(out_ch, in_ch, k, k)

    if stride != 1:
        # TODO(synk): stride>1 requires strided in-kernel slicing that lowers
        # poorly in Mosaic; fall back to XLA conv for that path.
        out = lax.conv_general_dilated(
            x_nchw, filt, (stride, stride),
            ((padding, padding), (padding, padding)),
            dimension_numbers=("NCHW", "OIHW", "NCHW"))
        return out + bias[None, :, None, None]

    # NOTE: for tiny channel counts (like this unit test) plain XLA conv is
    # faster than any Pallas launch; the Pallas path pays off at >=64 channels.
    return conv2d_pallas(x_nchw, filt, bias, padding=padding, ho_tile=ho_tile)


# ------------------------------------------------------------------
# Pure-JAX reference (independent: dense block-diag + lax.conv)
# ------------------------------------------------------------------
def reference_forward(x_nchw, R, weight_oihw, bias, *, eps, stride, padding):
    out_ch, in_ch, k, _ = weight_oihw.shape
    kk = k * k
    R_proj = project_batch(R, eps * kk * kk)
    Q = cayley_batch(R_proj)
    bd = block_diag(*[Q[i] for i in range(in_ch)])
    filt = (bd @ weight_oihw.reshape(kk * in_ch, out_ch)).reshape(
        out_ch, in_ch, k, k)
    out = lax.conv_general_dilated(
        x_nchw, filt, (stride, stride),
        ((padding, padding), (padding, padding)),
        dimension_numbers=("NCHW", "OIHW", "NCHW"))
    return out + bias[None, :, None, None]


if __name__ == "__main__":
    # OFTInjectedConv2d(in_channels=4, out_channels=8, kernel_size=(3,3),
    #                   stride=1, padding=1, bias=True, eps=1e-3)
    N, CIN, COUT, H, W, K = 2, 4, 8, 16, 16, 3
    STRIDE, PADDING, EPS = 1, 1, 1e-3

    key = jax.random.PRNGKey(0)
    k1, k2, k3, k4 = jax.random.split(key, 4)
    x = jax.random.normal(k1, (N, CIN, H, W), jnp.float32)
    weight = jax.random.normal(k2, (COUT, CIN, K, K), jnp.float32) / jnp.sqrt(
        jnp.float32(CIN * K * K))
    bias = 0.1 * jax.random.normal(k3, (COUT,), jnp.float32)
    # R is zeros in __init__; use small random values so the projection /
    # Cayley / rotation path is exercised non-trivially (still deterministic).
    R = 0.01 * jax.random.normal(k4, (CIN, K * K, K * K), jnp.float32)

    out = oft_injected_conv2d_forward(
        x, R, weight, bias, eps=EPS, stride=STRIDE, padding=PADDING, ho_tile=8)
    out = jax.block_until_ready(out)

    ref = reference_forward(
        x, R, weight, bias, eps=EPS, stride=STRIDE, padding=PADDING)
    ref = jax.block_until_ready(ref)

    assert out.shape == (N, COUT, H, W), out.shape
    max_err = float(jnp.max(jnp.abs(out - ref)))
    assert max_err < 5e-2, f"mismatch vs reference: max_err={max_err}"

    print("KERNEL_OK")
</pallas_src>

<mosaic_0001>
module attributes {stable_mosaic.version = 11 : i64} {
  func.func @_rotate_kernel(%arg0: i32, %arg1: memref<4x9x9xf32, #tpu.memory_space<vmem>>, %arg2: memref<4x9x128xf32, #tpu.memory_space<vmem>>, %arg3: memref<4x9x128xf32, #tpu.memory_space<vmem>>) attributes {dimension_semantics = [#tpu.dimension_semantics<parallel>], iteration_bounds = array<i64: 1>, scalar_prefetch = 0 : i64, scratch_operands = 0 : i64, tpu.core_type = #tpu.core_type<tc>, window_params = [{transform_indices = @transform_0, window_bounds = array<i64: 4, 9, 9>}, {transform_indices = @transform_1, window_bounds = array<i64: 4, 9, 128>}, {transform_indices = @transform_2, window_bounds = array<i64: 4, 9, 128>}]} {
    %c0 = arith.constant 0 : index
    %c0_0 = arith.constant 0 : index
    %c0_1 = arith.constant 0 : index
    %0 = vector.load %arg1[%c0, %c0_0, %c0_1] : memref<4x9x9xf32, #tpu.memory_space<vmem>>, vector<4x9x9xf32>
    %c0_2 = arith.constant 0 : index
    %c0_3 = arith.constant 0 : index
    %c0_4 = arith.constant 0 : index
    %1 = vector.load %arg2[%c0_2, %c0_3, %c0_4] : memref<4x9x128xf32, #tpu.memory_space<vmem>>, vector<4x9x128xf32>
    "tpu.trace_start"() <{level = 10 : i32, message = "cab,cbo->cao"}> : () -> ()
    %cst = arith.constant dense<0.000000e+00> : vector<4x9x128xf32>
    %2 = tpu.matmul %0, %1, %cst {dimension_numbers = #tpu.dot_dimension_numbers<[2], [1], [1], [2], [0, 0, 0, 1, 1, 2], [0], [0]>} : vector<4x9x9xf32>, vector<4x9x128xf32>, vector<4x9x128xf32> -> vector<4x9x128xf32>
    "tpu.trace_stop"() : () -> ()
    %c0_5 = arith.constant 0 : index
    %c0_6 = arith.constant 0 : index
    %c0_7 = arith.constant 0 : index
    %3 = vector.load %arg3[%c0_5, %c0_6, %c0_7] : memref<4x9x128xf32, #tpu.memory_space<vmem>>, vector<4x9x128xf32>
    tpu.vector_store %arg3[%c0_5, %c0_6, %c0_7], %2 {strides = array<i32>} : memref<4x9x128xf32, #tpu.memory_space<vmem>>, vector<4x9x128xf32>,
    return
  }
  func.func @transform_0(%arg0: i32) -> (i32, i32, i32) {
    %c0_i32 = arith.constant 0 : i32
    %c0_i32_0 = arith.constant 0 : i32
    %c0_i32_1 = arith.constant 0 : i32
    return %arg0, %c0_i32, %c0_i32_0 : i32, i32, i32
  }
  func.func @transform_1(%arg0: i32) -> (i32, i32, i32) {
    %c0_i32 = arith.constant 0 : i32
    %c0_i32_0 = arith.constant 0 : i32
    %c0_i32_1 = arith.constant 0 : i32
    return %arg0, %c0_i32, %c0_i32_0 : i32, i32, i32
  }
  func.func @transform_2(%arg0: i32) -> (i32, i32, i32) {
    %c0_i32 = arith.constant 0 : i32
    %c0_i32_0 = arith.constant 0 : i32
    %c0_i32_1 = arith.constant 0 : i32
    return %arg0, %c0_i32, %c0_i32_0 : i32, i32, i32
  }
}

</mosaic_0001>

<llo_original>
// kernel: tpu_custom_call.1
$region0: #{tpu_custom_call.1}
  #allocation0 [shape = 'u32[]', space=smem, size = 0x4, offset = 0x4, fixed_abs, tag = 'smem constant byte address 0x4 - core index']
  #allocation1 [shape = 'u32[144,128]{1,0:T(1,128)}', space=vmem, size = 0x12000, scoped, tag = 'internal scratch']
  %s0 = inlined_call_operand.vmem [shape: f32[4,9,9], index: 0, kind: input, shape index: {}]
  %s1 = inlined_call_operand.vmem [shape: f32[4,9,128], index: 1, kind: input, shape index: {}]
  %s2 = inlined_call_operand.vmem [shape: f32[4,9,128], index: 2, kind: output, shape index: {}]
  %s3 = sld [smem:[#allocation0]]
  $region18: #{tpu_custom_call.1} parent=0
    _
  %s5 = ssub.s32 1, %s3
  %s6 = scalar_select 0, %s5, %s3
  // Predicated region
  $region2: #{tpu_custom_call.1} parent=0 // pred_check
    _
  $region3: #{tpu_custom_call.1} parent=0 // pred_check_branch
    %8 = sbr.rel (0) target = $region5
  $region4: #{tpu_custom_call.1} parent=0 // pred_region
    _
  $region5: #{tpu_custom_call.1} parent=0 // pred_fallthru
    _
  // Predicated region
  $region6: #{tpu_custom_call.1} parent=0 // pred_check
    _
  $region7: #{tpu_custom_call.1} parent=0 // pred_check_branch
    %10 = sbr.rel (0) target = $region9
  $region8: #{tpu_custom_call.1} parent=0 // pred_region
    _
  $region9: #{tpu_custom_call.1} parent=0 // pred_fallthru
    _
  %v11 = vld [vmem:[%s0] sm:$0xff]
  %v12 = vld [vmem:[%s0 + $0x8] sm:$0x1]
  %v13 = vld [vmem:[%s0 + $0x10] sm:$0xff]
  %v14 = vld [vmem:[%s0 + $0x18] sm:$0x1]
  %v15 = vld [vmem:[%s0 + $0x20] sm:$0xff]
  %v16 = vld [vmem:[%s0 + $0x28] sm:$0x1]
  %v17 = vld [vmem:[%s0 + $0x30] sm:$0xff]
  %v18 = vld [vmem:[%s0 + $0x38] sm:$0x1]
  %v19 = vld [vmem:[%s1] sm:$0xff]
  %v20 = vld [vmem:[%s1 + $0x8] sm:$0x1]
  %v21 = vld [vmem:[%s1 + $0x10] sm:$0xff]
  %v22 = vld [vmem:[%s1 + $0x18] sm:$0x1]
  %v23 = vld [vmem:[%s1 + $0x20] sm:$0xff]
  %v24 = vld [vmem:[%s1 + $0x28] sm:$0x1]
  %v25 = vld [vmem:[%s1 + $0x30] sm:$0xff]
  %v26 = vld [vmem:[%s1 + $0x38] sm:$0x1]
  %vm27 = vcmask 72704
  %v29 = vsel %vm27, %v11, 0
  %v32 = vsel %vm27, %v12, 0
  %vm34 = vcmask 1040384
  %v36 = vsel %vm34, %v20, 0
  %38 = vmatprep.subr.mxu0 0.0
  %39 = vmatpush1.msra.mxu0 %v19
  %40 = vmatprep.subr.mxu0 0.0
  %41 = vmatpush1.msra.mxu0 %v36
  %42 = vmatprep.subr.mxu0 0.0
  %43 = vmatpush1.msra.mxu0 0.0
  %44 = vmatprep.subr.mxu0 0.0
  %45 = vmatpush1.msra.mxu0 0.0
  %46 = vmatprep.subr.mxu0 0.0
  %47 = vmatpush1.msra.mxu0 0.0
  %48 = vmatprep.subr.mxu0 0.0
  %49 = vmatpush1.msra.mxu0 0.0
  %50 = vmatprep.subr.mxu0 0.0
  %51 = vmatpush1.msra.mxu0 0.0
  %52 = vmatprep.subr.mxu0 0.0
  %53 = vmatpush1.msra.mxu0 0.0
  %54 = vmatprep.subr.mxu0 0.0
  %55 = vmatpush1.msra.mxu0 0.0
  %56 = vmatprep.subr.mxu0 0.0
  %57 = vmatpush1.msra.mxu0 0.0
  %58 = vmatprep.subr.mxu0 0.0
  %59 = vmatpush1.msra.mxu0 0.0
  %60 = vmatprep.subr.mxu0 0.0
  %61 = vmatpush1.msra.mxu0 0.0
  %62 = vmatprep.subr.mxu0 0.0
  %63 = vmatpush1.msra.mxu0 0.0
  %64 = vmatprep.subr.mxu0 0.0
  %65 = vmatpush1.msra.mxu0 0.0
  %66 = vmatprep.subr.mxu0 0.0
  %67 = vmatpush1.msra.mxu0 0.0
  %68 = vmatprep.subr.mxu0 0.0
  %69 = vmatpush1.msra.mxu0 0.0
  %70 = vmatprep.subr.mxu0 0.0
  %71 = vmatpush1.msra.mxu0 0.0
  %72 = vmatprep.subr.mxu0 0.0
  %73 = vmatpush1.msra.mxu0 0.0
  %74 = vmatprep.subr.mxu0 0.0
  %75 = vmatpush1.msra.mxu0 0.0
  %76 = vmatprep.subr.mxu0 0.0
  %77 = vmatpush1.msra.mxu0 0.0
  %78 = vmatprep.subr.mxu0 0.0
  %79 = vmatpush1.msra.mxu0 0.0
  %80 = vmatprep.subr.mxu0 0.0
  %81 = vmatpush1.msra.mxu0 0.0
  %82 = vmatprep.subr.mxu0 0.0
  %83 = vmatpush1.msra.mxu0 0.0
  %84 = vmatprep.subr.mxu0 0.0
  %85 = vmatpush1.msra.mxu0 0.0
  %86 = vmatprep.subr.mxu0 0.0
  %87 = vmatpush1.msra.mxu0 0.0
  %88 = vmatprep.subr.mxu0 0.0
  %89 = vmatpush1.msra.mxu0 0.0
  %90 = vmatprep.subr.mxu0 0.0
  %91 = vmatpush1.msra.mxu0 0.0
  %92 = vmatprep.subr.mxu0 0.0
  %93 = vmatpush1.msra.mxu0 0.0
  %94 = vmatprep.subr.mxu0 0.0
  %95 = vmatpush1.msra.mxu0 0.0
  %96 = vmatprep.subr.mxu0 0.0
  %97 = vmatpush1.msra.mxu0 0.0
  %98 = vmatprep.subr.mxu0 0.0
  %99 = vmatpush1.msra.mxu0 0.0
  %100 = vmatprep.subr.mxu0 0.0
  %101 = vmatpush1.msra.mxu0 0.0
  %102 = vmatprep.mubr.f32.mxu0 0.0
  %103 = vmatmul.mubr.f32.gmra.mrb[0].mxu0 %v29
  %v104 = vpop.f32.mrb[0].mxu0
  %v105 = vadd.f32 0.0, %v104
  %v106 = vpop.f32.mrb[0].mxu0
  %107 = vmatprep.mubr.f32.mxu0 0.0
  %108 = vmatmul.mubr.f32.gmra.mrb[0].mxu0 %v32
  %v109 = vpop.f32.mrb[0].mxu0
  %v110 = vadd.f32 0.0, %v109
  %v111 = vpop.f32.mrb[0].mxu0
  %112 = vdwg.mxu0
  %v114 = vsel %vm27, %v13, 0
  %v117 = vsel %vm27, %v14, 0
  %v120 = vsel %vm34, %v22, 0
  %122 = vmatprep.subr.mxu0 0.0
  %123 = vmatpush1.msra.mxu0 %v21
  %124 = vmatprep.subr.mxu0 0.0
  %125 = vmatpush1.msra.mxu0 %v120
  %126 = vmatprep.subr.mxu0 0.0
  %127 = vmatpush1.msra.mxu0 0.0
  %128 = vmatprep.subr.mxu0 0.0
  %129 = vmatpush1.msra.mxu0 0.0
  %130 = vmatprep.subr.mxu0 0.0
  %131 = vmatpush1.msra.mxu0 0.0
  %132 = vmatprep.subr.mxu0 0.0
  %133 = vmatpush1.msra.mxu0 0.0
  %134 = vmatprep.subr.mxu0 0.0
  %135 = vmatpush1.msra.mxu0 0.0
  %136 = vmatprep.subr.mxu0 0.0
  %137 = vmatpush1.msra.mxu0 0.0
  %138 = vmatprep.subr.mxu0 0.0
  %139 = vmatpush1.msra.mxu0 0.0
  %140 = vmatprep.subr.mxu0 0.0
  %141 = vmatpush1.msra.mxu0 0.0
  %142 = vmatprep.subr.mxu0 0.0
  %143 = vmatpush1.msra.mxu0 0.0
  %144 = vmatprep.subr.mxu0 0.0
  %145 = vmatpush1.msra.mxu0 0.0
  %146 = vmatprep.subr.mxu0 0.0
  %147 = vmatpush1.msra.mxu0 0.0
  %148 = vmatprep.subr.mxu0 0.0
  %149 = vmatpush1.msra.mxu0 0.0
  %150 = vmatprep.subr.mxu0 0.0
  %151 = vmatpush1.msra.mxu0 0.0
  %152 = vmatprep.subr.mxu0 0.0
  %153 = vmatpush1.msra.mxu0 0.0
  %154 = vmatprep.subr.mxu0 0.0
  %155 = vmatpush1.msra.mxu0 0.0
  %156 = vmatprep.subr.mxu0 0.0
  %157 = vmatpush1.msra.mxu0 0.0
  %158 = vmatprep.subr.mxu0 0.0
  %159 = vmatpush1.msra.mxu0 0.0
  %160 = vmatprep.subr.mxu0 0.0
  %161 = vmatpush1.msra.mxu0 0.0
  %162 = vmatprep.subr.mxu0 0.0
  %163 = vmatpush1.msra.mxu0 0.0
  %164 = vmatprep.subr.mxu0 0.0
  %165 = vmatpush1.msra.mxu0 0.0
  %166 = vmatprep.subr.mxu0 0.0
  %167 = vmatpush1.msra.mxu0 0.0
  %168 = vmatprep.subr.mxu0 0.0
  %169 = vmatpush1.msra.mxu0 0.0
  %170 = vmatprep.subr.mxu0 0.0
  %171 = vmatpush1.msra.mxu0 0.0
  %172 = vmatprep.subr.mxu0 0.0
  %173 = vmatpush1.msra.mxu0 0.0
  %174 = vmatprep.subr.mxu0 0.0
  %175 = vmatpush1.msra.mxu0 0.0
  %176 = vmatprep.subr.mxu0 0.0
  %177 = vmatpush1.msra.mxu0 0.0
  %178 = vmatprep.subr.mxu0 0.0
  %179 = vmatpush1.msra.mxu0 0.0
  %180 = vmatprep.subr.mxu0 0.0
  %181 = vmatpush1.msra.mxu0 0.0
  %182 = vmatprep.subr.mxu0 0.0
  %183 = vmatpush1.msra.mxu0 0.0
  %184 = vmatprep.subr.mxu0 0.0
  %185 = vmatpush1.msra.mxu0 0.0
  %186 = vmatprep.mubr.f32.mxu0 0.0
  %187 = vmatmul.mubr.f32.gmra.mrb[0].mxu0 %v114
  %v188 = vpop.f32.mrb[0].mxu0
  %v189 = vadd.f32 0.0, %v188
  %v190 = vpop.f32.mrb[0].mxu0
  %191 = vmatprep.mubr.f32.mxu0 0.0
  %192 = vmatmul.mubr.f32.gmra.mrb[0].mxu0 %v117
  %v193 = vpop.f32.mrb[0].mxu0
  %v194 = vadd.f32 0.0, %v193
  %v195 = vpop.f32.mrb[0].mxu0
  %196 = vdwg.mxu0
  %v198 = vsel %vm27, %v15, 0
  %v201 = vsel %vm27, %v16, 0
  %v204 = vsel %vm34, %v24, 0
  %206 = vmatprep.subr.mxu0 0.0
  %207 = vmatpush1.msra.mxu0 %v23
  %208 = vmatprep.subr.mxu0 0.0
  %209 = vmatpush1.msra.mxu0 %v204
  %210 = vmatprep.subr.mxu0 0.0
  %211 = vmatpush1.msra.mxu0 0.0
  %212 = vmatprep.subr.mxu0 0.0
  %213 = vmatpush1.msra.mxu0 0.0
  %214 = vmatprep.subr.mxu0 0.0
  %215 = vmatpush1.msra.mxu0 0.0
  %216 = vmatprep.subr.mxu0 0.0
  %217 = vmatpush1.msra.mxu0 0.0
  %218 = vmatprep.subr.mxu0 0.0
  %219 = vmatpush1.msra.mxu0 0.0
  %220 = vmatprep.subr.mxu0 0.0
  %221 = vmatpush1.msra.mxu0 0.0
  %222 = vmatprep.subr.mxu0 0.0
  %223 = vmatpush1.msra.mxu0 0.0
  %224 = vmatprep.subr.mxu0 0.0
  %225 = vmatpush1.msra.mxu0 0.0
  %226 = vmatprep.subr.mxu0 0.0
  %227 = vmatpush1.msra.mxu0 0.0
  %228 = vmatprep.subr.mxu0 0.0
  %229 = vmatpush1.msra.mxu0 0.0
  %230 = vmatprep.subr.mxu0 0.0
  %231 = vmatpush1.msra.mxu0 0.0
  %232 = vmatprep.subr.mxu0 0.0
  %233 = vmatpush1.msra.mxu0 0.0
  %234 = vmatprep.subr.mxu0 0.0
  %235 = vmatpush1.msra.mxu0 0.0
  %236 = vmatprep.subr.mxu0 0.0
  %237 = vmatpush1.msra.mxu0 0.0
  %238 = vmatprep.subr.mxu0 0.0
  %239 = vmatpush1.msra.mxu0 0.0
  %240 = vmatprep.subr.mxu0 0.0
  %241 = vmatpush1.msra.mxu0 0.0
  %242 = vmatprep.subr.mxu0 0.0
  %243 = vmatpush1.msra.mxu0 0.0
  %244 = vmatprep.subr.mxu0 0.0
  %245 = vmatpush1.msra.mxu0 0.0
  %246 = vmatprep.subr.mxu0 0.0
  %247 = vmatpush1.msra.mxu0 0.0
  %248 = vmatprep.subr.mxu0 0.0
  %249 = vmatpush1.msra.mxu0 0.0
  %250 = vmatprep.subr.mxu0 0.0
  %251 = vmatpush1.msra.mxu0 0.0
  %252 = vmatprep.subr.mxu0 0.0
  %253 = vmatpush1.msra.mxu0 0.0
  %254 = vmatprep.subr.mxu0 0.0
  %255 = vmatpush1.msra.mxu0 0.0
  %256 = vmatprep.subr.mxu0 0.0
  %257 = vmatpush1.msra.mxu0 0.0
  %258 = vmatprep.subr.mxu0 0.0
  %259 = vmatpush1.msra.mxu0 0.0
  %260 = vmatprep.subr.mxu0 0.0
  %261 = vmatpush1.msra.mxu0 0.0
  %262 = vmatprep.subr.mxu0 0.0
  %263 = vmatpush1.msra.mxu0 0.0
  %264 = vmatprep.subr.mxu0 0.0
  %265 = vmatpush1.msra.mxu0 0.0
  %266 = vmatprep.subr.mxu0 0.0
  %267 = vmatpush1.msra.mxu0 0.0
  %268 = vmatprep.subr.mxu0 0.0
  %269 = vmatpush1.msra.mxu0 0.0
  %270 = vmatprep.mubr.f32.mxu0 0.0
  %271 = vmatmul.mubr.f32.gmra.mrb[0].mxu0 %v198
  %v272 = vpop.f32.mrb[0].mxu0
  %v273 = vadd.f32 0.0, %v272
  %v274 = vpop.f32.mrb[0].mxu0
  %275 = vmatprep.mubr.f32.mxu0 0.0
  %276 = vmatmul.mubr.f32.gmra.mrb[0].mxu0 %v201
  %v277 = vpop.f32.mrb[0].mxu0
  %v278 = vadd.f32 0.0, %v277
  %v279 = vpop.f32.mrb[0].mxu0
  %280 = vdwg.mxu0
  %v282 = vsel %vm27, %v17, 0
  %v285 = vsel %vm27, %v18, 0
  %v288 = vsel %vm34, %v26, 0
  %290 = vmatprep.subr.mxu0 0.0
  %291 = vmatpush1.msra.mxu0 %v25
  %292 = vmatprep.subr.mxu0 0.0
  %293 = vmatpush1.msra.mxu0 %v288
  %294 = vmatprep.subr.mxu0 0.0
  %295 = vmatpush1.msra.mxu0 0.0
  %296 = vmatprep.subr.mxu0 0.0
  %297 = vmatpush1.msra.mxu0 0.0
  %298 = vmatprep.subr.mxu0 0.0
  %299 = vmatpush1.msra.mxu0 0.0
  %300 = vmatprep.subr.mxu0 0.0
  %301 = vmatpush1.msra.mxu0 0.0
  %302 = vmatprep.subr.mxu0 0.0
  %303 = vmatpush1.msra.mxu0 0.0
  %304 = vmatprep.subr.mxu0 0.0
  %305 = vmatpush1.msra.mxu0 0.0
  %306 = vmatprep.subr.mxu0 0.0
  %307 = vmatpush1.msra.mxu0 0.0
  %308 = vmatprep.subr.mxu0 0.0
  %309 = vmatpush1.msra.mxu0 0.0
  %310 = vmatprep.subr.mxu0 0.0
  %311 = vmatpush1.msra.mxu0 0.0
  %312 = vmatprep.subr.mxu0 0.0
  %313 = vmatpush1.msra.mxu0 0.0
  %314 = vmatprep.subr.mxu0 0.0
  %315 = vmatpush1.msra.mxu0 0.0
  %316 = vmatprep.subr.mxu0 0.0
  %317 = vmatpush1.msra.mxu0 0.0
  %318 = vmatprep.subr.mxu0 0.0
  %319 = vmatpush1.msra.mxu0 0.0
  %320 = vmatprep.subr.mxu0 0.0
  %321 = vmatpush1.msra.mxu0 0.0
  %322 = vmatprep.subr.mxu0 0.0
  %323 = vmatpush1.msra.mxu0 0.0
  %324 = vmatprep.subr.mxu0 0.0
  %325 = vmatpush1.msra.mxu0 0.0
  %326 = vmatprep.subr.mxu0 0.0
  %327 = vmatpush1.msra.mxu0 0.0
  %328 = vmatprep.subr.mxu0 0.0
  %329 = vmatpush1.msra.mxu0 0.0
  %330 = vmatprep.subr.mxu0 0.0
  %331 = vmatpush1.msra.mxu0 0.0
  %332 = vmatprep.subr.mxu0 0.0
  %333 = vmatpush1.msra.mxu0 0.0
  %334 = vmatprep.subr.mxu0 0.0
  %335 = vmatpush1.msra.mxu0 0.0
  %336 = vmatprep.subr.mxu0 0.0
  %337 = vmatpush1.msra.mxu0 0.0
  %338 = vmatprep.subr.mxu0 0.0
  %339 = vmatpush1.msra.mxu0 0.0
  %340 = vmatprep.subr.mxu0 0.0
  %341 = vmatpush1.msra.mxu0 0.0
  %342 = vmatprep.subr.mxu0 0.0
  %343 = vmatpush1.msra.mxu0 0.0
  %344 = vmatprep.subr.mxu0 0.0
  %345 = vmatpush1.msra.mxu0 0.0
  %346 = vmatprep.subr.mxu0 0.0
  %347 = vmatpush1.msra.mxu0 0.0
  %348 = vmatprep.subr.mxu0 0.0
  %349 = vmatpush1.msra.mxu0 0.0
  %350 = vmatprep.subr.mxu0 0.0
  %351 = vmatpush1.msra.mxu0 0.0
  %352 = vmatprep.subr.mxu0 0.0
  %353 = vmatpush1.msra.mxu0 0.0
  %354 = vmatprep.mubr.f32.mxu0 0.0
  %355 = vmatmul.mubr.f32.gmra.mrb[0].mxu0 %v282
  %v356 = vpop.f32.mrb[0].mxu0
  %v357 = vadd.f32 0.0, %v356
  %v358 = vpop.f32.mrb[0].mxu0
  %359 = vmatprep.mubr.f32.mxu0 0.0
  %360 = vmatmul.mubr.f32.gmra.mrb[0].mxu0 %v285
  %v361 = vpop.f32.mrb[0].mxu0
  %v362 = vadd.f32 0.0, %v361
  %v363 = vpop.f32.mrb[0].mxu0
  %364 = vdwg.mxu0
  %365 = vst [vmem:[%s2] sm:$0xff] %v105
  %366 = vst [vmem:[%s2 + $0x8] sm:$0x1] %v110
  %367 = vst [vmem:[%s2 + $0x10] sm:$0xff] %v189
  %368 = vst [vmem:[%s2 + $0x18] sm:$0x1] %v194
  %369 = vst [vmem:[%s2 + $0x20] sm:$0xff] %v273
  %370 = vst [vmem:[%s2 + $0x28] sm:$0x1] %v278
  %371 = vst [vmem:[%s2 + $0x30] sm:$0xff] %v357
  %372 = vst [vmem:[%s2 + $0x38] sm:$0x1] %v362
  // Predicated region
  $region10: #{tpu_custom_call.1} parent=0 // pred_check
    _
  $region11: #{tpu_custom_call.1} parent=0 // pred_check_branch
    %374 = sbr.rel (0) target = $region13
  $region12: #{tpu_custom_call.1} parent=0 // pred_region
    _
  $region13: #{tpu_custom_call.1} parent=0 // pred_fallthru
    _
  // Predicated region
  $region14: #{tpu_custom_call.1} parent=0 // pred_check
    _
  $region15: #{tpu_custom_call.1} parent=0 // pred_check_branch
    %376 = sbr.rel (0) target = $region17
  $region16: #{tpu_custom_call.1} parent=0 // pred_region
    _
  $region17: #{tpu_custom_call.1} parent=0 // pred_fallthru
    _

</llo_original>
